<compile_context>
chip_gen: v5e
topology: v5e:2x2
jax: 0.10.0
libtpu: 0.0.40
codegen_flags: <defaults>
</compile_context>

<pallas_src>
import jax
import jax.numpy as jnp
from jax.experimental import pallas as pl
from jax.experimental.pallas import tpu as pltpu


# Per-tile byte budget (one pipeline buffer of one operand).  With the input
# and the (aliased) output each double-buffered this is ~8 MiB of VMEM,
# comfortably under the 32 MiB scoped default on v5e / v6e / v7x.
_TILE_BYTES = 2 * 1024 * 1024


def _copy_kernel(x_ref, o_ref):
    # Identity copy; with input/output aliasing this is free to elide.
    o_ref[...] = x_ref[...]


def _whole_array_copy(x: jax.Array) -> jax.Array:
    """Single full-array block, no grid (tiny / oddly-shaped inputs)."""
    ndim = x.ndim
    return pl.pallas_call(
        _copy_kernel,
        out_shape=jax.ShapeDtypeStruct(x.shape, x.dtype),
        in_specs=[pl.BlockSpec(x.shape, lambda *_: (0,) * ndim)],
        out_specs=pl.BlockSpec(x.shape, lambda *_: (0,) * ndim),
        input_output_aliases={0: 0},
    )(x)


def _tiled_copy(slab: jax.Array, block_rows: int) -> jax.Array:
    """Lane-dense, tiled, pipelined copy over a (rows, cols) slab."""
    rows, cols = slab.shape
    return pl.pallas_call(
        _copy_kernel,
        out_shape=jax.ShapeDtypeStruct(slab.shape, slab.dtype),
        grid=(rows // block_rows,),
        in_specs=[pl.BlockSpec((block_rows, cols), lambda i: (i, 0))],
        out_specs=pl.BlockSpec((block_rows, cols), lambda i: (i, 0)),
        input_output_aliases={0: 0},
        compiler_params=pltpu.CompilerParams(
            dimension_semantics=("parallel",)),
    )(slab)


def _pick_lane_dense_cols(n: int) -> int:
    # Widest multiple of 128 dividing n -> unmasked, lane-dense stores.
    for c in (4096, 2048, 1024, 512, 256, 128):
        if n % c == 0:
            return c
    return 0


def _pick_block_rows(rows: int, cols: int, itemsize: int) -> int:
    max_rows = max(1, _TILE_BYTES // (cols * itemsize))
    for br in (1024, 512, 256, 128, 64, 32, 16, 8):
        if br <= max_rows and rows % br == 0:
            return br
    if rows * cols * itemsize <= _TILE_BYTES:
        return rows  # single block equal to the full array: always legal
    # TODO(synk): add a masked remainder tile for huge, non-divisible slabs.
    return 0


def reshape_module(x: jax.Array, new_shape) -> jax.Array:
    """Pallas equivalent of ReshapeModule.forward(x, new_shape)."""
    n = x.size
    itemsize = jnp.dtype(x.dtype).itemsize
    cols = _pick_lane_dense_cols(n)
    block_rows = _pick_block_rows(n // cols, cols, itemsize) if cols else 0

    if cols and block_rows:
        # Present the flat data as a lane-dense 2-D slab (metadata-only
        # reshape), stream it through the tiled, aliased copy kernel.
        slab = jnp.reshape(x, (n // cols, cols))
        copied = _tiled_copy(slab, block_rows)
    else:
        # Tiny input (e.g. the module's (4, 4) test case): one whole-array
        # block; tiling/pipelining would be pure launch overhead here.
        copied = _whole_array_copy(x)

    # The reshape itself is metadata-only (row-major), same as torch.reshape.
    return jnp.reshape(copied, new_shape)


if __name__ == "__main__":
    key = jax.random.PRNGKey(0)

    # Module spec: input_shapes() -> [(4, 4)]; reshape to (2, 8).
    x_small = jax.random.normal(key, (4, 4), dtype=jnp.float32)
    out_small = jax.block_until_ready(reshape_module(x_small, (2, 8)))
    ref_small = jnp.reshape(x_small, (2, 8))
    assert out_small.shape == (2, 8), out_small.shape
    assert out_small.dtype == x_small.dtype
    assert bool(jnp.array_equal(out_small, ref_small)), "mismatch on (4,4)->(2,8)"

    # Also exercise the tiled, lane-dense path (grid > 1) on a modest input.
    x_big = jax.random.normal(key, (2048, 512), dtype=jnp.float32)
    out_big = jax.block_until_ready(reshape_module(x_big, (1024, 1024)))
    ref_big = jnp.reshape(x_big, (1024, 1024))
    assert out_big.shape == (1024, 1024), out_big.shape
    assert bool(jnp.array_equal(out_big, ref_big)), "mismatch on tiled path"

    print("KERNEL_OK")
</pallas_src>

<mosaic_0001>
module attributes {stable_mosaic.version = 11 : i64} {
  func.func @_copy_kernel(%arg0: memref<4x4xf32, #tpu.memory_space<vmem>>, %arg1: memref<4x4xf32, #tpu.memory_space<vmem>>) attributes {dimension_semantics = [], scalar_prefetch = 0 : i64, scratch_operands = 0 : i64, tpu.core_type = #tpu.core_type<tc>} {
    %c0 = arith.constant 0 : index
    %c0_0 = arith.constant 0 : index
    %0 = vector.load %arg0[%c0, %c0_0] : memref<4x4xf32, #tpu.memory_space<vmem>>, vector<4x4xf32>
    %c0_1 = arith.constant 0 : index
    %c0_2 = arith.constant 0 : index
    %1 = vector.load %arg1[%c0_1, %c0_2] : memref<4x4xf32, #tpu.memory_space<vmem>>, vector<4x4xf32>
    tpu.vector_store %arg1[%c0_1, %c0_2], %0 {strides = array<i32>} : memref<4x4xf32, #tpu.memory_space<vmem>>, vector<4x4xf32>,
    return
  }
}

</mosaic_0001>

<llo_original>
// kernel: tpu_custom_call.1
$region0: #{tpu_custom_call.1}
  #allocation0 [shape = 'u32[]', space=smem, size = 0x4, offset = 0x4, fixed_abs, tag = 'smem constant byte address 0x4 - core index']
  #allocation1 [shape = 'u32[72,128]{1,0:T(1,128)}', space=vmem, size = 0x9000, scoped, tag = 'internal scratch']
  %s0 = inlined_call_operand.hbm [shape: f32[4,4], index: 0, kind: input, shape index: {}, may-alias: {0,1}]
  %s1 = inlined_call_operand.hbm [shape: f32[4,4], index: 1, kind: output, shape index: {}, may-alias: {0,1}]
  %s2 = sld [smem:[#allocation0]]
  $region18: #{tpu_custom_call.1} parent=0
    _
  %s4 = ssub.s32 1, %s2
  %s5 = scalar_select 0, %s4, %s2
  $region1: #{tpu_custom_call.1} parent=0
    #allocation2 [shape = 'u8[2048]{0}', space=vmem, size = 0x800, scoped, tag = 'input window, operand 0, single buffered']
    #allocation3 [shape = 's32[1]{0}', space=sflag, size = 0x4, scoped, tag = 'scoped memory for tpu_custom_call.1']
    #allocation4 [shape = 's32[1]{0}', space=sflag, size = 0x4, scoped, tag = 'scoped memory for tpu_custom_call.1']
    #allocation5 [shape = 'u8[2048]{0}', space=vmem, size = 0x800, scoped, tag = 'output window, operand 0, single buffered']
    %6 = vsyncpa [#allocation3], 0
    %7 = vsyncpa [#allocation4], 0
    // Predicated region
    $region2: #{tpu_custom_call.1} parent=1 // pred_check
      _
    $region3: #{tpu_custom_call.1} parent=1 // pred_check_branch
      %9 = sbr.rel (0) target = $region5
    $region4: #{tpu_custom_call.1} parent=1 // pred_region
      %11 = vsyncadd [#allocation3], 0
      %s13 = sshll.u32 %s0, 4
      %s14 = int_to_ptr.hbm [resolvable:$true] %s13
      %s15 = sshll.u32 [#allocation2], 4
      %s16 = int_to_ptr.vmem [resolvable:$true] %s15
      %18 = dma.hbm_to_vmem [thread:$0]  %s14, 64, %s16, [#allocation3]
    $region5: #{tpu_custom_call.1} parent=1 // pred_fallthru
      _
    // Predicated region
    $region6: #{tpu_custom_call.1} parent=1 // pred_check
      _
    $region7: #{tpu_custom_call.1} parent=1 // pred_check_branch
      %20 = sbr.rel (0) target = $region9
    $region8: #{tpu_custom_call.1} parent=1 // pred_region
      %22 = dma.done [#allocation3], 64
    $region9: #{tpu_custom_call.1} parent=1 // pred_fallthru
      _
    %v23 = vld [vmem:[#allocation2] sm:$0xf]
    %vm24 = vcmask 27648
    %25 = vst.msk [vmem:[#allocation5] sm:$0xf] %vm24, %v23
    // Predicated region
    $region10: #{tpu_custom_call.1} parent=1 // pred_check
      _
    $region11: #{tpu_custom_call.1} parent=1 // pred_check_branch
      %27 = sbr.rel (0) target = $region13
    $region12: #{tpu_custom_call.1} parent=1 // pred_region
      %29 = vsyncadd [#allocation4], 0
      %s31 = sshll.u32 [#allocation5], 4
      %s32 = int_to_ptr.vmem [resolvable:$true] %s31
      %s33 = sshll.u32 %s1, 4
      %s34 = int_to_ptr.hbm [resolvable:$true] %s33
      %36 = dma.vmem_to_hbm [thread:$0]  %s32, 64, %s34, [#allocation4]
    $region13: #{tpu_custom_call.1} parent=1 // pred_fallthru
      _
    // Predicated region
    $region14: #{tpu_custom_call.1} parent=1 // pred_check
      _
    $region15: #{tpu_custom_call.1} parent=1 // pred_check_branch
      %38 = sbr.rel (0) target = $region17
    $region16: #{tpu_custom_call.1} parent=1 // pred_region
      %40 = dma.done [#allocation4], 64
    $region17: #{tpu_custom_call.1} parent=1 // pred_fallthru
      _
    %41 = vsyncpa [#allocation3], 1
    %42 = vsyncpa [#allocation4], 1

</llo_original>
